<compile_context>
chip_gen: v5e
topology: v5e:2x2
jax: 0.10.0
libtpu: 0.0.40
codegen_flags: <defaults>
</compile_context>

<pallas_src>
import functools

import jax
import jax.numpy as jnp
from jax.experimental import pallas as pl
from jax.experimental.pallas import tpu as pltpu


def _ffn_kernel(x_ref, w1_ref, b1_ref, w2_ref, b2_ref, o_ref, *, approximate_gelu):
    # bf16 operands, f32 accumulation on the MXU.
    x = x_ref[...].astype(jnp.bfloat16)                               # [TM, d_in]
    h = jnp.dot(x, w1_ref[...], preferred_element_type=jnp.float32)   # [TM, d_hid] f32
    h = h + b1_ref[...]
    # tanh GELU runs on the EUP slot; erf form (approximate_gelu=False) matches
    # torch.nn.functional.gelu's default bit-for-bit but is VALU-heavy.
    h = jax.nn.gelu(h, approximate=approximate_gelu)
    y = jnp.dot(h.astype(jnp.bfloat16), w2_ref[...],
                preferred_element_type=jnp.float32)                   # [TM, d_in] f32
    y = y + b2_ref[...]
    o_ref[...] = y.astype(o_ref.dtype)


def _pick_row_tile(n_rows, max_rows):
    """Row tile: prefer an 8-aligned divisor of n_rows (no pad), else full array,
    else fall back to padding."""
    cap = min(max_rows, n_rows)
    start = cap - cap % 8
    for tm in range(start, 7, -8):
        if n_rows % tm == 0:
            return tm, False
    if n_rows <= max_rows:
        return n_rows, False           # single full-extent block is always legal
    tm = start if start > 0 else n_rows
    return tm, True                    # last resort: pad rows


def _resident_spec(shape):
    """Constant-index BlockSpec, single-buffered when the kwarg is available."""
    try:
        return pl.BlockSpec(shape, lambda i: (0, 0), pipeline_mode=pl.Buffered(1))
    except TypeError:  # older jax without pipeline_mode on BlockSpec
        return pl.BlockSpec(shape, lambda i: (0, 0))


def _vmem_limit_bytes(footprint):
    try:
        phys = pltpu.get_tpu_info().vmem_capacity_bytes
    except Exception:
        phys = 64 << 20                # conservative (v7x-sized) fallback
    ceiling = int(phys * 0.8)          # leave headroom for Mosaic scratch/sems
    return int(min(max(2 * footprint, 4 << 20), ceiling))


def positionwise_ffn(x, w1, b1, w2, b2, *, block_rows=512, approximate_gelu=True):
    """y = w2(gelu(w1(x))) applied position-wise over the last dim of x.

    Dropout is identity (eval mode). Matmuls use bf16 operands + f32 accumulation.
    """
    orig_shape = x.shape
    d_in = orig_shape[-1]
    d_hid = w1.shape[1]

    # Fold every leading dim into one row axis (position-wise op is exact here).
    x2 = x.reshape(-1, d_in)
    n_rows = x2.shape[0]

    tm, needs_pad = _pick_row_tile(n_rows, block_rows)
    n_steps = pl.cdiv(n_rows, tm)
    rows_pad = n_steps * tm
    if needs_pad and rows_pad != n_rows:
        x2 = jnp.pad(x2, ((0, rows_pad - n_rows), (0, 0)))

    # Cast weights to bf16 once (wrapper side); keep biases in f32 (added to the
    # f32 accumulator inside the kernel).
    w1b = w1.astype(jnp.bfloat16)
    w2b = w2.astype(jnp.bfloat16)
    b1r = b1.astype(jnp.float32).reshape(1, d_hid)
    b2r = b2.astype(jnp.float32).reshape(1, d_in)

    # VMEM footprint from actual dtypes:
    #   x tile (2 bufs) + out tile (2 bufs) + single-buffered weights/biases
    #   + GELU pre/post activation (f32) + bf16 copy of h.
    xb = jnp.dtype(x.dtype).itemsize
    ob = xb
    footprint = (
        2 * tm * d_in * xb                       # x tile, double-buffered
        + 2 * tm * d_in * ob                     # out tile, double-buffered
        + (d_in * d_hid + d_hid * d_in) * 2      # bf16 weights, single-buffered
        + (d_hid + d_in) * 4                     # f32 biases
        + 2 * tm * d_hid * 4                     # f32 h pre/post GELU
        + tm * d_hid * 2                         # bf16 h for second matmul
    )
    vmem_limit = _vmem_limit_bytes(footprint)

    kernel = functools.partial(_ffn_kernel, approximate_gelu=approximate_gelu)

    in_specs = [
        pl.BlockSpec((tm, d_in), lambda i: (i, 0)),   # x rows, tiled
        _resident_spec((d_in, d_hid)),                # w1 (resident, 1 buffer)
        _resident_spec((1, d_hid)),                   # b1
        _resident_spec((d_hid, d_in)),                # w2 (resident, 1 buffer)
        _resident_spec((1, d_in)),                    # b2
    ]
    out_spec = pl.BlockSpec((tm, d_in), lambda i: (i, 0))
    out_shape = jax.ShapeDtypeStruct((rows_pad, d_in), x.dtype)

    y2 = pl.pallas_call(
        kernel,
        grid=(n_steps,),
        in_specs=in_specs,
        out_specs=out_spec,
        out_shape=out_shape,
        compiler_params=pltpu.CompilerParams(
            dimension_semantics=("parallel",),
            vmem_limit_bytes=vmem_limit,
        ),
    )(x2, w1b, b1r, w2b, b2r)

    if needs_pad and rows_pad != n_rows:
        y2 = y2[:n_rows]
    return y2.reshape(orig_shape)


def reference(x, w1, b1, w2, b2):
    """Pure-JAX f32 reference of the PyTorch forward (eval mode: dropout = id)."""
    h = jax.nn.gelu(x @ w1 + b1, approximate=False)
    return h @ w2 + b2


if __name__ == "__main__":
    B, N, d_in, d_hid = 2, 8, 32, 64

    key = jax.random.PRNGKey(0)
    ks = jax.random.split(key, 5)
    x = jax.random.normal(ks[0], (B, N, d_in), jnp.float32)

    s = 0.1
    w1 = s * jax.random.normal(ks[1], (d_in, d_hid), jnp.float32)
    b1 = s * jax.random.normal(ks[2], (d_hid,), jnp.float32)
    w2 = s * jax.random.normal(ks[3], (d_hid, d_in), jnp.float32)
    b2 = s * jax.random.normal(ks[4], (d_in,), jnp.float32)

    # block_rows=8 -> 2 grid steps at these tiny shapes (exercises the pipeline
    # and keeps both v7x TensorCores busy); production shapes use the default
    # block_rows=512 for MXU-sized row tiles.
    out = positionwise_ffn(x, w1, b1, w2, b2, block_rows=8)
    jax.block_until_ready(out)

    ref = reference(x, w1, b1, w2, b2)
    assert out.shape == (B, N, d_in)
    max_err = float(jnp.max(jnp.abs(out - ref)))
    # bf16 matmul operands + tanh GELU vs. f32/erf reference -> a few 1e-3.
    assert max_err < 5e-2, f"max abs error {max_err}"
    print("KERNEL_OK")
</pallas_src>

<mosaic_0001>
module attributes {stable_mosaic.version = 11 : i64} {
  func.func @_ffn_kernel(%arg0: i32, %arg1: memref<8x32xf32, #tpu.memory_space<vmem>>, %arg2: memref<32x64xbf16, #tpu.memory_space<vmem>>, %arg3: memref<1x64xf32, #tpu.memory_space<vmem>>, %arg4: memref<64x32xbf16, #tpu.memory_space<vmem>>, %arg5: memref<1x32xf32, #tpu.memory_space<vmem>>, %arg6: memref<8x32xf32, #tpu.memory_space<vmem>>) attributes {dimension_semantics = [#tpu.dimension_semantics<parallel>], iteration_bounds = array<i64: 2>, scalar_prefetch = 0 : i64, scratch_operands = 0 : i64, tpu.core_type = #tpu.core_type<tc>, window_params = [{transform_indices = @transform_0, window_bounds = array<i64: 8, 32>}, {pipeline_mode = #tpu.pipeline_mode<synchronous>, transform_indices = @transform_1, window_bounds = array<i64: 32, 64>}, {pipeline_mode = #tpu.pipeline_mode<synchronous>, transform_indices = @transform_2, window_bounds = array<i64: 1, 64>}, {pipeline_mode = #tpu.pipeline_mode<synchronous>, transform_indices = @transform_3, window_bounds = array<i64: 64, 32>}, {pipeline_mode = #tpu.pipeline_mode<synchronous>, transform_indices = @transform_4, window_bounds = array<i64: 1, 32>}, {transform_indices = @transform_5, window_bounds = array<i64: 8, 32>}]} {
    %c0 = arith.constant 0 : index
    %c0_0 = arith.constant 0 : index
    %0 = vector.load %arg1[%c0, %c0_0] : memref<8x32xf32, #tpu.memory_space<vmem>>, vector<8x32xf32>
    %1 = arith.truncf %0 : vector<8x32xf32> to vector<8x32xbf16>
    %c0_1 = arith.constant 0 : index
    %c0_2 = arith.constant 0 : index
    %2 = vector.load %arg2[%c0_1, %c0_2] : memref<32x64xbf16, #tpu.memory_space<vmem>>, vector<32x64xbf16>
    %cst = arith.constant dense<0.000000e+00> : vector<8x64xf32>
    %3 = tpu.matmul %1, %2, %cst {dimension_numbers = #tpu.dot_dimension_numbers<[1], [0], [0], [1], [0, 0, 1, 1], [], []>} : vector<8x32xbf16>, vector<32x64xbf16>, vector<8x64xf32> -> vector<8x64xf32>
    %c0_3 = arith.constant 0 : index
    %c0_4 = arith.constant 0 : index
    %4 = vector.load %arg3[%c0_3, %c0_4] : memref<1x64xf32, #tpu.memory_space<vmem>>, vector<1x64xf32>
    %5 = vector.broadcast %4 : vector<1x64xf32> to vector<8x64xf32>
    %6 = arith.addf %3, %5 : vector<8x64xf32>
    %7 = arith.mulf %6, %6 : vector<8x64xf32>
    %8 = arith.mulf %6, %7 : vector<8x64xf32>
    %cst_5 = arith.constant 4.471500e-02 : f32
    %9 = vector.broadcast %cst_5 : f32 to vector<8x64xf32>
    %10 = arith.mulf %9, %8 : vector<8x64xf32>
    %11 = arith.addf %6, %10 : vector<8x64xf32>
    %cst_6 = arith.constant 0.797884583 : f32
    %12 = vector.broadcast %cst_6 : f32 to vector<8x64xf32>
    %13 = arith.mulf %12, %11 : vector<8x64xf32>
    %14 = math.tanh %13 : vector<8x64xf32>
    %cst_7 = arith.constant 1.000000e+00 : f32
    %15 = vector.broadcast %cst_7 : f32 to vector<8x64xf32>
    %16 = arith.addf %15, %14 : vector<8x64xf32>
    %cst_8 = arith.constant 5.000000e-01 : f32
    %17 = vector.broadcast %cst_8 : f32 to vector<8x64xf32>
    %18 = arith.mulf %17, %16 : vector<8x64xf32>
    %19 = arith.mulf %6, %18 : vector<8x64xf32>
    %20 = arith.truncf %19 : vector<8x64xf32> to vector<8x64xbf16>
    %c0_9 = arith.constant 0 : index
    %c0_10 = arith.constant 0 : index
    %21 = vector.load %arg4[%c0_9, %c0_10] : memref<64x32xbf16, #tpu.memory_space<vmem>>, vector<64x32xbf16>
    %cst_11 = arith.constant dense<0.000000e+00> : vector<8x32xf32>
    %22 = tpu.matmul %20, %21, %cst_11 {dimension_numbers = #tpu.dot_dimension_numbers<[1], [0], [0], [1], [0, 0, 1, 1], [], []>} : vector<8x64xbf16>, vector<64x32xbf16>, vector<8x32xf32> -> vector<8x32xf32>
    %c0_12 = arith.constant 0 : index
    %c0_13 = arith.constant 0 : index
    %23 = vector.load %arg5[%c0_12, %c0_13] : memref<1x32xf32, #tpu.memory_space<vmem>>, vector<1x32xf32>
    %24 = vector.broadcast %23 : vector<1x32xf32> to vector<8x32xf32>
    %25 = arith.addf %22, %24 : vector<8x32xf32>
    %c0_14 = arith.constant 0 : index
    %c0_15 = arith.constant 0 : index
    %26 = vector.load %arg6[%c0_14, %c0_15] : memref<8x32xf32, #tpu.memory_space<vmem>>, vector<8x32xf32>
    tpu.vector_store %arg6[%c0_14, %c0_15], %25 {strides = array<i32>} : memref<8x32xf32, #tpu.memory_space<vmem>>, vector<8x32xf32>,
    return
  }
  func.func @transform_0(%arg0: i32) -> (i32, i32) {
    %c0_i32 = arith.constant 0 : i32
    %c0_i32_0 = arith.constant 0 : i32
    return %arg0, %c0_i32 : i32, i32
  }
  func.func @transform_1(%arg0: i32) -> (i32, i32) {
    %c0_i32 = arith.constant 0 : i32
    %c0_i32_0 = arith.constant 0 : i32
    %c0_i32_1 = arith.constant 0 : i32
    return %c0_i32, %c0_i32_0 : i32, i32
  }
  func.func @transform_2(%arg0: i32) -> (i32, i32) {
    %c0_i32 = arith.constant 0 : i32
    %c0_i32_0 = arith.constant 0 : i32
    %c0_i32_1 = arith.constant 0 : i32
    return %c0_i32, %c0_i32_0 : i32, i32
  }
  func.func @transform_3(%arg0: i32) -> (i32, i32) {
    %c0_i32 = arith.constant 0 : i32
    %c0_i32_0 = arith.constant 0 : i32
    %c0_i32_1 = arith.constant 0 : i32
    return %c0_i32, %c0_i32_0 : i32, i32
  }
  func.func @transform_4(%arg0: i32) -> (i32, i32) {
    %c0_i32 = arith.constant 0 : i32
    %c0_i32_0 = arith.constant 0 : i32
    %c0_i32_1 = arith.constant 0 : i32
    return %c0_i32, %c0_i32_0 : i32, i32
  }
  func.func @transform_5(%arg0: i32) -> (i32, i32) {
    %c0_i32 = arith.constant 0 : i32
    %c0_i32_0 = arith.constant 0 : i32
    return %arg0, %c0_i32 : i32, i32
  }
}

</mosaic_0001>

<llo_original>
// kernel: tpu_custom_call.1
$region0: #{tpu_custom_call.1}
  #allocation0 [shape = 'u32[]', space=smem, size = 0x4, offset = 0x4, fixed_abs, tag = 'smem constant byte address 0x4 - core index']
  #allocation1 [shape = 'u32[72,128]{1,0:T(1,128)}', space=vmem, size = 0x9000, scoped, tag = 'internal scratch']
  %s0 = inlined_call_operand.vmem [shape: f32[16,32], index: 0, kind: input, shape index: {}]
  %s1 = inlined_call_operand.vmem [shape: bf16[32,64], index: 1, kind: input, shape index: {}]
  %s2 = inlined_call_operand.vmem [shape: f32[1,64], index: 2, kind: input, shape index: {}]
  %s3 = inlined_call_operand.vmem [shape: bf16[64,32], index: 3, kind: input, shape index: {}]
  %s4 = inlined_call_operand.vmem [shape: f32[1,32], index: 4, kind: input, shape index: {}]
  %s5 = inlined_call_operand.hbm [shape: f32[16,32], index: 5, kind: output, shape index: {}]
  %s6 = sld [smem:[#allocation0]]
  $region53: #{tpu_custom_call.1} parent=0
    _
  %s8 = ssub.s32 1, %s6
  %s9 = scalar_select 0, %s8, %s6
  $region1: #{tpu_custom_call.1} parent=0
    #allocation2 [shape = 'u8[8192]{0}', space=vmem, size = 0x2000, scoped, tag = 'output window, operand 0']
    #allocation3 [shape = 's32[2]{0}', space=sflag, size = 0x8, scoped, tag = 'scoped memory for tpu_custom_call.1']
    %10 = vsyncpa [#allocation3], 0
    %s11 = scalar_lea.sflag [#allocation3], 1
    %12 = vsyncpa %s11, 0
    loop: start=0, step=1, limit=4
    $region2: #{tpu_custom_call.1} parent=1 // loop_pre_header
      _
    $region3: #{tpu_custom_call.1} parent=1 // loop_header
      %s14 = sphi 0, %s18
      %p15 = scmp.ge.s32.totalorder %s14, 4
      %s24 = sphi 0, %s26
      %s27 = sphi 0, %s24
      %s28 = sphi 0, %s27
      %s44 = sphi 0, %s28
      %s48 = sphi 0, %s48
      %s50 = sphi 0, %s48
      %s51 = sphi 0, %s50
      %s65 = sphi 0, %s51
      %s69 = sphi 0, %s69
      %s71 = sphi 0, %s69
      %s72 = sphi 0, %s71
      %s86 = sphi 0, %s72
      %s90 = sphi 0, %s90
      %s92 = sphi 0, %s90
      %s93 = sphi 0, %s92
      %s107 = sphi 0, %s93
      %s111 = sphi 0, %s111
      %s113 = sphi 0, %s111
      %s114 = sphi 0, %s113
      %s128 = sphi 0, %s114
      %s134 = sphi 0, %s136
      %s137 = sphi 0, %s134
      %s138 = sphi 0, %s137
      %s154 = sphi 0, %s138
    $region4: #{tpu_custom_call.1} parent=1 // loop_header_branch
      %17 = sbr.rel (%p15) target = $region8
    $region5: #{tpu_custom_call.1} parent=1 // loop_body
      %s19 = ssub.s32 %s14, 1
      %s20 = ssub.s32 %s14, 2
      %s21 = sadd.s32 %s14, 1
      %s22 = ssub.s32 %s14, %s21
      %p23 = scmp.eq.s32.totalorder %s22, 0
      %s25 = sadd.s32 %s24, 1
      %s26 = scalar_select %p23, %s24, %s25
      %p29 = pneg %p23
      %p30 = scmp.eq.s32.totalorder %s14, 1
      %p31 = por %p29, %p30
      %p32 = scmp.ne.s32.totalorder %s24, %s27
      %p33 = scmp.eq.s32.totalorder %s14, 0
      %p34 = por %p32, %p33
      %p35 = scmp.ne.s32.totalorder %s24, %s27
      %p36 = scmp.eq.s32.totalorder %s19, 1
      %p37 = por %p35, %p36
      %p38 = scmp.ne.s32.totalorder %s27, %s28
      %p39 = scmp.eq.s32.totalorder %s19, 0
      %p40 = por %p38, %p39
      %p41 = scmp.ne.s32.totalorder %s27, %s28
      %p42 = scmp.eq.s32.totalorder %s20, 1
      %p43 = por %p41, %p42
      %p45 = scmp.ne.s32.totalorder %s28, %s44
      %p46 = scmp.eq.s32.totalorder %s20, 0
      %p47 = por %p45, %p46
      %s49 = sadd.s32 %s48, 1
      %p52 = scmp.eq.s32.totalorder %s14, 1
      %p53 = scmp.ne.s32.totalorder %s48, %s50
      %p54 = scmp.eq.s32.totalorder %s14, 0
      %p55 = por %p53, %p54
      %p56 = scmp.ne.s32.totalorder %s48, %s50
      %p57 = scmp.eq.s32.totalorder %s19, 1
      %p58 = por %p56, %p57
      %p59 = scmp.ne.s32.totalorder %s50, %s51
      %p60 = scmp.eq.s32.totalorder %s19, 0
      %p61 = por %p59, %p60
      %p62 = scmp.ne.s32.totalorder %s50, %s51
      %p63 = scmp.eq.s32.totalorder %s20, 1
      %p64 = por %p62, %p63
      %p66 = scmp.ne.s32.totalorder %s51, %s65
      %p67 = scmp.eq.s32.totalorder %s20, 0
      %p68 = por %p66, %p67
      %s70 = sadd.s32 %s69, 1
      %p73 = scmp.eq.s32.totalorder %s14, 1
      %p74 = scmp.ne.s32.totalorder %s69, %s71
      %p75 = scmp.eq.s32.totalorder %s14, 0
      %p76 = por %p74, %p75
      %p77 = scmp.ne.s32.totalorder %s69, %s71
      %p78 = scmp.eq.s32.totalorder %s19, 1
      %p79 = por %p77, %p78
      %p80 = scmp.ne.s32.totalorder %s71, %s72
      %p81 = scmp.eq.s32.totalorder %s19, 0
      %p82 = por %p80, %p81
      %p83 = scmp.ne.s32.totalorder %s71, %s72
      %p84 = scmp.eq.s32.totalorder %s20, 1
      %p85 = por %p83, %p84
      %p87 = scmp.ne.s32.totalorder %s72, %s86
      %p88 = scmp.eq.s32.totalorder %s20, 0
      %p89 = por %p87, %p88
      %s91 = sadd.s32 %s90, 1
      %p94 = scmp.eq.s32.totalorder %s14, 1
      %p95 = scmp.ne.s32.totalorder %s90, %s92
      %p96 = scmp.eq.s32.totalorder %s14, 0
      %p97 = por %p95, %p96
      %p98 = scmp.ne.s32.totalorder %s90, %s92
      %p99 = scmp.eq.s32.totalorder %s19, 1
      %p100 = por %p98, %p99
      %p101 = scmp.ne.s32.totalorder %s92, %s93
      %p102 = scmp.eq.s32.totalorder %s19, 0
      %p103 = por %p101, %p102
      %p104 = scmp.ne.s32.totalorder %s92, %s93
      %p105 = scmp.eq.s32.totalorder %s20, 1
      %p106 = por %p104, %p105
      %p108 = scmp.ne.s32.totalorder %s93, %s107
      %p109 = scmp.eq.s32.totalorder %s20, 0
      %p110 = por %p108, %p109
      %s112 = sadd.s32 %s111, 1
      %p115 = scmp.eq.s32.totalorder %s14, 1
      %p116 = scmp.ne.s32.totalorder %s111, %s113
      %p117 = scmp.eq.s32.totalorder %s14, 0
      %p118 = por %p116, %p117
      %p119 = scmp.ne.s32.totalorder %s111, %s113
      %p120 = scmp.eq.s32.totalorder %s19, 1
      %p121 = por %p119, %p120
      %p122 = scmp.ne.s32.totalorder %s113, %s114
      %p123 = scmp.eq.s32.totalorder %s19, 0
      %p124 = por %p122, %p123
      %p125 = scmp.ne.s32.totalorder %s113, %s114
      %p126 = scmp.eq.s32.totalorder %s20, 1
      %p127 = por %p125, %p126
      %p129 = scmp.ne.s32.totalorder %s114, %s128
      %p130 = scmp.eq.s32.totalorder %s20, 0
      %p131 = por %p129, %p130
      %s132 = ssub.s32 %s14, %s21
      %p133 = scmp.eq.s32.totalorder %s132, 0
      %s135 = sadd.s32 %s134, 1
      %s136 = scalar_select %p133, %s134, %s135
      %p139 = pneg %p133
      %p140 = scmp.eq.s32.totalorder %s14, 1
      %p141 = por %p139, %p140
      %p142 = scmp.ne.s32.totalorder %s134, %s137
      %p143 = scmp.eq.s32.totalorder %s14, 0
      %p144 = por %p142, %p143
      %p145 = scmp.ne.s32.totalorder %s134, %s137
      %p146 = scmp.eq.s32.totalorder %s19, 1
      %p147 = por %p145, %p146
      %p148 = scmp.ne.s32.totalorder %s137, %s138
      %p149 = scmp.eq.s32.totalorder %s19, 0
      %p150 = por %p148, %p149
      %p151 = scmp.ne.s32.totalorder %s137, %s138
      %p152 = scmp.eq.s32.totalorder %s20, 1
      %p153 = por %p151, %p152
      %p155 = scmp.ne.s32.totalorder %s138, %s154
      %p156 = scmp.eq.s32.totalorder %s20, 0
      %p157 = por %p155, %p156
      %p158 = scmp.le.s32.totalorder 1, %s14
      %p159 = scmp.lt.s32.totalorder %s14, 3
      %p160 = pnand %p158, %p159
      %p161 = pneg %p160
      // Predicated region
      $region9: #{tpu_custom_call.1} parent=5 // pred_check
        _
      $region10: #{tpu_custom_call.1} parent=5 // pred_check_branch
        %163 = sbr.rel (%p160) target = $region12
      $region11: #{tpu_custom_call.1} parent=5 // pred_region
        %s164 = ssub.s32 %s14, 1
        // Predicated region
        $region13: #{tpu_custom_call.1} parent=11 // pred_check
          %p165 = pneg %p61
        $region14: #{tpu_custom_call.1} parent=11 // pred_check_branch
          %167 = sbr.rel (%p165) target = $region16
        $region15: #{tpu_custom_call.1} parent=11 // pred_region
          _
        $region16: #{tpu_custom_call.1} parent=11 // pred_fallthru
          _
        // Predicated region
        $region17: #{tpu_custom_call.1} parent=11 // pred_check
          %p168 = pneg %p82
        $region18: #{tpu_custom_call.1} parent=11 // pred_check_branch
          %170 = sbr.rel (%p168) target = $region20
        $region19: #{tpu_custom_call.1} parent=11 // pred_region
          _
        $region20: #{tpu_custom_call.1} parent=11 // pred_fallthru
          _
        // Predicated region
        $region21: #{tpu_custom_call.1} parent=11 // pred_check
          %p171 = pneg %p103
        $region22: #{tpu_custom_call.1} parent=11 // pred_check_branch
          %173 = sbr.rel (%p171) target = $region24
        $region23: #{tpu_custom_call.1} parent=11 // pred_region
          _
        $region24: #{tpu_custom_call.1} parent=11 // pred_fallthru
          _
        // Predicated region
        $region25: #{tpu_custom_call.1} parent=11 // pred_check
          %p174 = pneg %p124
        $region26: #{tpu_custom_call.1} parent=11 // pred_check_branch
          %176 = sbr.rel (%p174) target = $region28
        $region27: #{tpu_custom_call.1} parent=11 // pred_region
          _
        $region28: #{tpu_custom_call.1} parent=11 // pred_fallthru
          _
      $region12: #{tpu_custom_call.1} parent=5 // pred_fallthru
        _
      %p177 = scmp.lt.s32.totalorder %s14, 2
      // Predicated region
      $region29: #{tpu_custom_call.1} parent=5 // pred_check
        %p178 = pneg %p177
      $region30: #{tpu_custom_call.1} parent=5 // pred_check_branch
        %180 = sbr.rel (%p178) target = $region32
      $region31: #{tpu_custom_call.1} parent=5 // pred_region
        // Predicated region
        $region33: #{tpu_custom_call.1} parent=31 // pred_check
          %p181 = pneg %p34
        $region34: #{tpu_custom_call.1} parent=31 // pred_check_branch
          %183 = sbr.rel (%p181) target = $region36
        $region35: #{tpu_custom_call.1} parent=31 // pred_region
          %p184 = scmp.lt.s32.totalorder %s14, 1
          %s185 = scalar_select %p184, %s14, 1
          %s186 = smul.addr %s185, 8
          %s187 = scalar_lea.vmem %s0, %s186
        $region36: #{tpu_custom_call.1} parent=31 // pred_fallthru
          _
      $region32: #{tpu_custom_call.1} parent=5 // pred_fallthru
        _
      %p188 = scmp.le.s32.totalorder 1, %s14
      %p189 = scmp.lt.s32.totalorder %s14, 3
      %p190 = pnand %p188, %p189
      %p191 = pneg %p190
      // Predicated region
      $region37: #{tpu_custom_call.1} parent=5 // pred_check
        _
      $region38: #{tpu_custom_call.1} parent=5 // pred_check_branch
        %193 = sbr.rel (%p190) target = $region40
      $region39: #{tpu_custom_call.1} parent=5 // pred_region
        %s194 = ssub.s32 %s14, 1
        %p195 = scmp.lt.s32.totalorder %s19, 1
        %s196 = scalar_select %p195, %s19, 1
        %s197 = smul.addr %s196, 8
        %s198 = scalar_lea.vmem %s0, %s197
        %p199 = pneg %p40
        %p200 = pneg %p37
        %p201 = pneg %p61
        %p202 = pneg %p58
        %p203 = pneg %p82
        %p204 = pneg %p79
        %p205 = pneg %p103
        %p206 = pneg %p100
        %p207 = pneg %p124
        %p208 = pneg %p121
        %p209 = pneg %p150
        %p210 = pneg %p147
        %s211 = sand.u32 %s137, 1
        %s212 = scalar_lea.sflag [#allocation3], %s211
        %s213 = sand.u32 %s137, 1
        %s214 = smul.addr %s213, 8
        %s215 = scalar_lea.vmem [#allocation2], %s214
        %p216 = scmp.lt.s32.totalorder %s19, 1
        %s217 = scalar_select %p216, %s19, 1
        %s218 = smul.addr %s217, 8
        %s219 = scalar_lea.vmem %s0, %s218
        %v221 = vld [vmem:[%s219] sm:$0xff]
        %v222 = vpack.c.bf16 %v221, %v221
        %v223 = vld [vmem:[%s1] sm:$0xf]
        %v224 = vld [vmem:[%s1 + $0x4] sm:$0xf]
        %v225 = vld [vmem:[%s1 + $0x8] sm:$0xf]
        %v226 = vld [vmem:[%s1 + $0xc] sm:$0xf]
        %v227 = vld [vmem:[%s2] sm:$0x1]
        %v229 = vperm.slane %v227, 0
        %v235 = vunpack.c.l.b16 %v223
        %v236 = vunpack.c.l.b16 %v224
        %v237 = vunpack.c.l.b16 %v225
        %v238 = vunpack.c.l.b16 %v226
        %v239 = vpack.c.b16 %v236, %v235
        %v240 = vpack.c.b16 %v238, %v237
        %vm243 = vcmask 261120
        %v245 = vsel %vm243, %v222, 0
        %247 = vmatpush.bf16.msra.mxu0 0
        %248 = vmatpush.bf16.msra.mxu0 0
        %249 = vmatpush.bf16.msra.mxu0 0
        %250 = vmatpush.bf16.msra.mxu0 0
        %251 = vmatpush.bf16.msra.mxu0 0
        %252 = vmatpush.bf16.msra.mxu0 0
        %253 = vmatpush.bf16.msra.mxu0 %v240
        %254 = vmatpush.bf16.msra.mxu0 %v239
        %255 = vmatmul.bf16.gmra.mxu0 %v245
        %v256 = vpop.f32.mrf.mxu0
        %v257 = vadd.f32 %v229, %v256
        %v258 = vpop.f32.mrf.mxu0
        %259 = vdwg.mxu0
        %v260 = vmul.f32 %v257, %v257
        %v261 = vmul.f32 %v257, %v260
        %v262 = vmul.f32 %v261, 0.044715
        %v263 = vadd.f32 %v257, %v262
        %v264 = vmul.f32 %v263, 0.7978846
        %v265 = vtanh.pop %v264
        %v266 = vadd.f32 %v265, 1.0
        %v267 = vmul.f32 %v266, 0.5
        %v268 = vmul.f32 %v257, %v267
        %v269 = vpack.c.bf16 %v268, %v268
        %v270 = vld [vmem:[%s3] sm:$0xf]
        %v271 = vld [vmem:[%s3 + $0x4] sm:$0xf]
        %v272 = vld [vmem:[%s3 + $0x8] sm:$0xf]
        %v273 = vld [vmem:[%s3 + $0xc] sm:$0xf]
        %v274 = vld [vmem:[%s3 + $0x10] sm:$0xf]
        %v275 = vld [vmem:[%s3 + $0x14] sm:$0xf]
        %v276 = vld [vmem:[%s3 + $0x18] sm:$0xf]
        %v277 = vld [vmem:[%s3 + $0x1c] sm:$0xf]
        %v278 = vld [vmem:[%s4] sm:$0x1]
        %v280 = vperm.slane %v278, 0
        %v290 = vunpack.c.l.b16 %v270
        %v291 = vunpack.c.l.b16 %v271
        %v292 = vunpack.c.l.b16 %v272
        %v293 = vunpack.c.l.b16 %v273
        %v294 = vunpack.c.l.b16 %v274
        %v295 = vunpack.c.l.b16 %v275
        %v296 = vunpack.c.l.b16 %v276
        %v297 = vunpack.c.l.b16 %v277
        %v298 = vpack.c.b16 %v291, %v290
        %v299 = vpack.c.b16 %v293, %v292
        %v300 = vpack.c.b16 %v295, %v294
        %v301 = vpack.c.b16 %v297, %v296
        %vm306 = vcmask 523264
        %v308 = vsel %vm306, %v269, 0
        %310 = vmatpush.bf16.msra.mxu0 0
        %311 = vmatpush.bf16.msra.mxu0 0
        %312 = vmatpush.bf16.msra.mxu0 0
        %313 = vmatpush.bf16.msra.mxu0 0
        %314 = vmatpush.bf16.msra.mxu0 %v301
        %315 = vmatpush.bf16.msra.mxu0 %v300
        %316 = vmatpush.bf16.msra.mxu0 %v299
        %317 = vmatpush.bf16.msra.mxu0 %v298
        %318 = vmatmul.bf16.gmra.mxu0 %v308
        %v319 = vpop.f32.mrf.mxu0
        %v320 = vadd.f32 %v280, %v319
        %v321 = vpop.f32.mrf.mxu0
        %322 = vdwg.mxu0
        %323 = vst.msk [vmem:[%s215] sm:$0xff] %vm243, %v320
        %s324 = sand.u32 %s137, 1
        %s325 = scalar_lea.sflag [#allocation3], %s324
        %s326 = sand.u32 %s137, 1
        %s327 = smul.addr %s326, 8
        %s328 = scalar_lea.vmem [#allocation2], %s327
        // Predicated region
        $region41: #{tpu_custom_call.1} parent=39 // pred_check
          %p329 = pneg %p147
        $region42: #{tpu_custom_call.1} parent=39 // pred_check_branch
          %331 = sbr.rel (%p329) target = $region44
        $region43: #{tpu_custom_call.1} parent=39 // pred_region
          %333 = vsyncadd %s325, 0
          %s334 = smul.addr %s19, 8
          %s335 = scalar_lea.hbm %s5, %s334
          %s337 = sshll.u32 %s328, 4
          %s338 = int_to_ptr.vmem [resolvable:$true] %s337
          %s339 = sshll.u32 %s335, 4
          %s340 = int_to_ptr.hbm [resolvable:$true] %s339
          %342 = dma.vmem_to_hbm [thread:$0]  %s338, 128, %s340, %s325
        $region44: #{tpu_custom_call.1} parent=39 // pred_fallthru
          _
      $region40: #{tpu_custom_call.1} parent=5 // pred_fallthru
        _
      %p343 = scmp.le.s32.totalorder 2, %s14
      // Predicated region
      $region45: #{tpu_custom_call.1} parent=5 // pred_check
        %p344 = pneg %p343
      $region46: #{tpu_custom_call.1} parent=5 // pred_check_branch
        %346 = sbr.rel (%p344) target = $region48
      $region47: #{tpu_custom_call.1} parent=5 // pred_region
        %s347 = ssub.s32 %s14, 2
        // Predicated region
        $region49: #{tpu_custom_call.1} parent=47 // pred_check
          %p348 = pneg %p153
        $region50: #{tpu_custom_call.1} parent=47 // pred_check_branch
          %350 = sbr.rel (%p348) target = $region52
        $region51: #{tpu_custom_call.1} parent=47 // pred_region
          %s351 = sand.u32 %s138, 1
          %s352 = scalar_lea.sflag [#allocation3], %s351
          %s353 = sand.u32 %s138, 1
          %s354 = smul.addr %s353, 8
          %s355 = scalar_lea.vmem [#allocation2], %s354
          %357 = dma.done %s352, 128
        $region52: #{tpu_custom_call.1} parent=47 // pred_fallthru
          _
      $region48: #{tpu_custom_call.1} parent=5 // pred_fallthru
        _
    $region6: #{tpu_custom_call.1} parent=1 // loop_footer
      %s18 = sadd.s32 1, %s14
    $region7: #{tpu_custom_call.1} parent=1 // loop_footer_branch
      %13 = sbr.rel target = $region3
    $region8: #{tpu_custom_call.1} parent=1 // loop_exit
      _
    %358 = vsyncpa [#allocation3], 1
    %s359 = scalar_lea.sflag [#allocation3], 1
    %360 = vsyncpa %s359, 1

</llo_original>
